<compile_context>
chip_gen: v7x
topology: tpu7x:2x2x1
jax: 0.10.0
libtpu: 0.0.40
codegen_flags: <defaults>
</compile_context>

<pallas_src>
import functools
import math

import jax
import jax.numpy as jnp
from jax.experimental import pallas as pl
from jax.experimental.pallas import tpu as pltpu


def make_positional_encoding_table(max_len: int, d_model: int) -> jnp.ndarray:
    """Sinusoidal table, identical math to the torch __init__ ((max_len, d_model), f32)."""
    position = jnp.arange(max_len, dtype=jnp.float32)[:, None]           # (L, 1)
    div_term = jnp.exp(
        jnp.arange(0, d_model, 2, dtype=jnp.float32)
        * (-math.log(10000.0) / d_model)
    )                                                                     # (D/2,)
    angles = position * div_term                                          # (L, D/2)
    pe = jnp.zeros((max_len, d_model), jnp.float32)
    pe = pe.at[:, 0::2].set(jnp.sin(angles))
    pe = pe.at[:, 1::2].set(jnp.cos(angles))
    return pe


def _pos_enc_kernel(seed_ref, x_ref, pe_ref, o_ref, *, batch: int, p: float,
                    use_tpu_prng: bool):
    # x_ref: (block_seq, batch*d_model) lane-dense VMEM tile (native dtype).
    # pe_ref: (block_seq, d_model) VMEM tile; broadcast over batch via a
    # lane-dim concat (VPU/XLU work, free under HBM slack for a mem-bound add).
    x = x_ref[...]
    pe = pe_ref[...]
    pe_row = pe if batch == 1 else jnp.concatenate([pe] * batch, axis=-1)
    y = x + pe_row

    if use_tpu_prng and p > 0.0:
        # Inverted dropout with the TPU hardware PRNG (same semantics as
        # nn.Dropout in training mode; RNG stream necessarily differs from
        # torch).  Seed mixes (user seed, grid step) so each block gets an
        # independent stream.
        pltpu.prng_seed(seed_ref[0], pl.program_id(0))
        bits = pltpu.bitcast(pltpu.prng_random_bits(y.shape), jnp.uint32)
        threshold = jnp.uint32(min(int(p * float(2**32)), 2**32 - 1))
        keep = bits >= threshold                      # P(keep) = 1 - p
        scale = jnp.asarray(1.0 / (1.0 - p), dtype=y.dtype)
        y = jnp.where(keep, y * scale, jnp.zeros_like(y))

    o_ref[...] = y.astype(o_ref.dtype)


def _choose_block_seq(seq_len: int, row_bytes: int,
                      target_bytes: int = 2 * 1024 * 1024) -> int:
    """Pick a seq block so each x tile is ~2 MiB, sublane dim a multiple of 8."""
    bs = max(1, target_bytes // max(1, row_bytes))
    bs = min(bs, seq_len)
    if bs < seq_len:
        bs = max(8, (bs // 8) * 8)
    return bs


def positional_encoding(
    x: jnp.ndarray,
    pe_table: jnp.ndarray,
    *,
    dropout_p: float = 0.1,
    training: bool = False,
    seed: int = 0,
    block_seq: int | None = None,
) -> jnp.ndarray:
    """x: (seq_len, batch, d_model). Returns dropout(x + pe[:seq_len])."""
    S, B, D = x.shape
    itemsize = jnp.dtype(x.dtype).itemsize

    pe_slice = pe_table[:S].astype(x.dtype)       # (S, D); add in native dtype (bf16 stays bf16)
    x2 = x.reshape(S, B * D)                      # lane-dense view; contiguous -> free

    if block_seq is None:
        bs = _choose_block_seq(S, B * D * itemsize)
    else:
        bs = min(block_seq, S)
    grid = (pl.cdiv(S, bs),)

    on_tpu = jax.default_backend() == "tpu"
    use_tpu_prng = bool(training and dropout_p > 0.0 and on_tpu)

    kernel = functools.partial(
        _pos_enc_kernel, batch=B, p=float(dropout_p), use_tpu_prng=use_tpu_prng
    )
    seed_arr = jnp.asarray([seed], dtype=jnp.int32)

    bytes_accessed = 2 * S * B * D * itemsize + S * D * itemsize
    cost = pl.CostEstimate(flops=S * B * D, transcendentals=0,
                           bytes_accessed=bytes_accessed)

    out2 = pl.pallas_call(
        kernel,
        out_shape=jax.ShapeDtypeStruct((S, B * D), x.dtype),
        grid_spec=pltpu.PrefetchScalarGridSpec(
            num_scalar_prefetch=1,                 # seed lands in SMEM
            grid=grid,
            in_specs=[
                pl.BlockSpec((bs, B * D), lambda i, seed_ref: (i, 0)),
                pl.BlockSpec((bs, D), lambda i, seed_ref: (i, 0)),
            ],
            out_specs=pl.BlockSpec((bs, B * D), lambda i, seed_ref: (i, 0)),
        ),
        compiler_params=pltpu.CompilerParams(
            # All blocks independent (no accumulator) -> lets v7x shard the
            # grid across both TensorCores; neutral on v5e/v6e.
            dimension_semantics=("parallel",),
            # ~2 MiB tiles, double-buffered in/out + in-kernel temporaries fit
            # comfortably; 32 MiB is safe on every generation incl. v7x (64 MiB
            # physical VMEM).
            vmem_limit_bytes=32 * 1024 * 1024,
        ),
        cost_estimate=cost,
    )(seed_arr, x2, pe_slice)

    out = out2.reshape(S, B, D)

    if training and dropout_p > 0.0 and not on_tpu:
        # TODO(synk): non-TPU fallback — pltpu.prng_* has no CPU/interpret
        # lowering, so apply the same inverted dropout in plain JAX here.
        keep = jax.random.bernoulli(jax.random.PRNGKey(seed), 1.0 - dropout_p, out.shape)
        out = jnp.where(keep, out * (1.0 / (1.0 - dropout_p)), 0).astype(x.dtype)

    return out


if __name__ == "__main__":
    # (seq, batch, d_model) — same axis convention as the torch module.
    # d_model=128 keeps even the toy problem lane-dense (real models use >=128).
    SEQ, BATCH, D_MODEL, MAX_LEN = 8, 2, 128, 64
    DROPOUT_P = 0.1

    key = jax.random.PRNGKey(0)
    x = jax.random.normal(key, (SEQ, BATCH, D_MODEL), dtype=jnp.float32)
    pe_table = make_positional_encoding_table(MAX_LEN, D_MODEL)

    ref = x + pe_table[:SEQ][:, None, :]

    # Eval mode: dropout is identity -> exact match with the reference math.
    out_eval = jax.block_until_ready(
        positional_encoding(x, pe_table, dropout_p=DROPOUT_P, training=False)
    )
    assert out_eval.shape == x.shape and out_eval.dtype == x.dtype
    assert jnp.allclose(out_eval, ref, atol=1e-6, rtol=1e-6)

    # Training mode: inverted dropout. Kept entries must equal (x+pe)/(1-p)
    # exactly, regardless of which PRNG produced the mask.
    out_train = jax.block_until_ready(
        positional_encoding(x, pe_table, dropout_p=DROPOUT_P, training=True, seed=1234)
    )
    assert out_train.shape == x.shape and out_train.dtype == x.dtype
    kept = out_train != 0
    scaled_ref = ref * (1.0 / (1.0 - DROPOUT_P))
    assert jnp.allclose(jnp.where(kept, out_train, 0.0),
                        jnp.where(kept, scaled_ref, 0.0), atol=1e-5, rtol=1e-5)
    assert bool(jnp.all(jnp.isfinite(out_train)))

    print("KERNEL_OK")
</pallas_src>

<mosaic_0001>
module attributes {stable_mosaic.version = 11 : i64} {
  func.func @_pos_enc_kernel(%arg0: i32, %arg1: memref<1xi32, #tpu.memory_space<smem>>, %arg2: memref<8x256xf32, #tpu.memory_space<vmem>>, %arg3: memref<8x128xf32, #tpu.memory_space<vmem>>, %arg4: memref<8x256xf32, #tpu.memory_space<vmem>>) attributes {dimension_semantics = [#tpu.dimension_semantics<parallel>], iteration_bounds = array<i64: 1>, scalar_prefetch = 1 : i64, scratch_operands = 0 : i64, tpu.core_type = #tpu.core_type<tc>, window_params = [{transform_indices = @transform_0, window_bounds = array<i64: 8, 256>}, {transform_indices = @transform_1, window_bounds = array<i64: 8, 128>}, {transform_indices = @transform_2, window_bounds = array<i64: 8, 256>}]} {
    %c0 = arith.constant 0 : index
    %c0_0 = arith.constant 0 : index
    %0 = vector.load %arg2[%c0, %c0_0] : memref<8x256xf32, #tpu.memory_space<vmem>>, vector<8x256xf32>
    %c0_1 = arith.constant 0 : index
    %c0_2 = arith.constant 0 : index
    %1 = vector.load %arg3[%c0_1, %c0_2] : memref<8x128xf32, #tpu.memory_space<vmem>>, vector<8x128xf32>
    %2 = tpu.concatenate %1, %1 in 1 : vector<8x128xf32>, vector<8x128xf32> -> vector<8x256xf32>
    %3 = arith.addf %0, %2 : vector<8x256xf32>
    %c0_3 = arith.constant 0 : index
    %c0_4 = arith.constant 0 : index
    %4 = vector.load %arg4[%c0_3, %c0_4] : memref<8x256xf32, #tpu.memory_space<vmem>>, vector<8x256xf32>
    tpu.vector_store %arg4[%c0_3, %c0_4], %3 {strides = array<i32>} : memref<8x256xf32, #tpu.memory_space<vmem>>, vector<8x256xf32>,
    return
  }
  func.func @transform_0(%arg0: i32, %arg1: memref<1xi32, #tpu.memory_space<smem>>) -> (i32, i32) {
    %c0_i32 = arith.constant 0 : i32
    %c0_i32_0 = arith.constant 0 : i32
    return %arg0, %c0_i32 : i32, i32
  }
  func.func @transform_1(%arg0: i32, %arg1: memref<1xi32, #tpu.memory_space<smem>>) -> (i32, i32) {
    %c0_i32 = arith.constant 0 : i32
    %c0_i32_0 = arith.constant 0 : i32
    return %arg0, %c0_i32 : i32, i32
  }
  func.func @transform_2(%arg0: i32, %arg1: memref<1xi32, #tpu.memory_space<smem>>) -> (i32, i32) {
    %c0_i32 = arith.constant 0 : i32
    %c0_i32_0 = arith.constant 0 : i32
    return %arg0, %c0_i32 : i32, i32
  }
}

</mosaic_0001>

<llo_original>
// kernel: tpu_custom_call.1
$region0: #{tpu_custom_call.1}
  #allocation0 [shape = 'u32[]', space=smem, size = 0x4, offset = 0x4, fixed_abs, tag = 'smem constant byte address 0x4 - core index']
  #allocation1 [shape = 'u32[144,128]{1,0:T(1,128)}', space=vmem, size = 0x12000, scoped, tag = 'internal scratch']
  #allocation2 [shape = 's32[1]{0}', space=sflag, size = 0x4, scoped, tag = 'scoped memory for tpu_custom_call.1']
  #allocation3 [shape = 's32[1]{0:T(128)S(6)}', space=smem, size = 0x200, scoped, tag = 'prefetched SMEM operand 0']
  %s0 = inlined_call_operand.<no memory space> [shape: s32[1], index: 0, kind: input, shape index: {}]
  %s1 = inlined_call_operand.hbm [shape: f32[8,256], index: 1, kind: input, shape index: {}]
  %s2 = inlined_call_operand.hbm [shape: f32[8,128], index: 2, kind: input, shape index: {}]
  %s3 = inlined_call_operand.hbm [shape: f32[8,256], index: 3, kind: output, shape index: {}]
  %s4 = sld [smem:[#allocation0]]
  $region26: #{tpu_custom_call.1} parent=0
    _
  %s6 = ssub.s32 1, %s4
  %s7 = scalar_select 0, %s6, %s4
  %8 = sst [smem:[#allocation3]] %s0
  $region1: #{tpu_custom_call.1} parent=0
    #allocation4 [shape = 'u8[8192]{0}', space=vmem, size = 0x2000, scoped, tag = 'input window, operand 1, single buffered']
    #allocation5 [shape = 's32[1]{0}', space=sflag, size = 0x4, scoped, tag = 'scoped memory for tpu_custom_call.1']
    #allocation6 [shape = 's32[1]{0}', space=sflag, size = 0x4, scoped, tag = 'scoped memory for tpu_custom_call.1']
    #allocation7 [shape = 'u8[4096]{0}', space=vmem, size = 0x1000, scoped, tag = 'input window, operand 2, single buffered']
    #allocation8 [shape = 's32[1]{0}', space=sflag, size = 0x4, scoped, tag = 'scoped memory for tpu_custom_call.1']
    #allocation9 [shape = 'u8[8192]{0}', space=vmem, size = 0x2000, scoped, tag = 'output window, operand 0, single buffered']
    %9 = vsyncpa [#allocation5], 0
    %10 = vsyncpa [#allocation8], 0
    %11 = vsyncpa [#allocation6], 0
    // Predicated region
    $region2: #{tpu_custom_call.1} parent=1 // pred_check
      _
    $region3: #{tpu_custom_call.1} parent=1 // pred_check_branch
      %13 = sbr.rel (0) target = $region5
    $region4: #{tpu_custom_call.1} parent=1 // pred_region
      %s15 = ssub.s32 256, 256
      %16 = vsyncadd [#allocation5], %s15
      %s18 = sshll.u32 [#allocation4], 4
      %s19 = int_to_ptr.vmem [resolvable:$true] %s18
      %21 = dma.hbm_to_vmem [thread:$0]  %s1, 256, %s19, [#allocation5]
    $region5: #{tpu_custom_call.1} parent=1 // pred_fallthru
      _
    // Predicated region
    $region6: #{tpu_custom_call.1} parent=1 // pred_check
      _
    $region7: #{tpu_custom_call.1} parent=1 // pred_check_branch
      %23 = sbr.rel (0) target = $region9
    $region8: #{tpu_custom_call.1} parent=1 // pred_region
      %s25 = ssub.s32 128, 128
      %26 = vsyncadd [#allocation8], %s25
      %s28 = sshll.u32 [#allocation7], 4
      %s29 = int_to_ptr.vmem [resolvable:$true] %s28
      %31 = dma.hbm_to_vmem [thread:$0]  %s2, 128, %s29, [#allocation8]
    $region9: #{tpu_custom_call.1} parent=1 // pred_fallthru
      _
    // Predicated region
    $region10: #{tpu_custom_call.1} parent=1 // pred_check
      _
    $region11: #{tpu_custom_call.1} parent=1 // pred_check_branch
      %33 = sbr.rel (0) target = $region13
    $region12: #{tpu_custom_call.1} parent=1 // pred_region
      %34 = dma.done [#allocation5], 256
    $region13: #{tpu_custom_call.1} parent=1 // pred_fallthru
      _
    // Predicated region
    $region14: #{tpu_custom_call.1} parent=1 // pred_check
      _
    $region15: #{tpu_custom_call.1} parent=1 // pred_check_branch
      %36 = sbr.rel (0) target = $region17
    $region16: #{tpu_custom_call.1} parent=1 // pred_region
      %37 = dma.done [#allocation8], 128
    $region17: #{tpu_custom_call.1} parent=1 // pred_fallthru
      _
    %v38 = vld [vmem:[#allocation4] sm:$0xff]
    %v39 = vld [vmem:[#allocation4 + $0x8] sm:$0xff]
    %v40 = vld [vmem:[#allocation7] sm:$0xff]
    %v41 = vadd.f32 %v38, %v40
    %v42 = vadd.f32 %v39, %v40
    %43 = vst [vmem:[#allocation9] sm:$0xff] %v41
    %44 = vst [vmem:[#allocation9 + $0x8] sm:$0xff] %v42
    // Predicated region
    $region18: #{tpu_custom_call.1} parent=1 // pred_check
      _
    $region19: #{tpu_custom_call.1} parent=1 // pred_check_branch
      %46 = sbr.rel (0) target = $region21
    $region20: #{tpu_custom_call.1} parent=1 // pred_region
      %s48 = ssub.s32 256, 256
      %49 = vsyncadd [#allocation6], %s48
      %s51 = sshll.u32 [#allocation9], 4
      %s52 = int_to_ptr.vmem [resolvable:$true] %s51
      %54 = dma.vmem_to_hbm [thread:$0]  %s52, 256, %s3, [#allocation6]
    $region21: #{tpu_custom_call.1} parent=1 // pred_fallthru
      _
    // Predicated region
    $region22: #{tpu_custom_call.1} parent=1 // pred_check
      _
    $region23: #{tpu_custom_call.1} parent=1 // pred_check_branch
      %56 = sbr.rel (0) target = $region25
    $region24: #{tpu_custom_call.1} parent=1 // pred_region
      %57 = dma.done [#allocation6], 256
    $region25: #{tpu_custom_call.1} parent=1 // pred_fallthru
      _
    %58 = vsyncpa [#allocation5], 1
    %59 = vsyncpa [#allocation8], 1
    %60 = vsyncpa [#allocation6], 1

</llo_original>
